<compile_context>
chip_gen: v7x
topology: tpu7x:2x2x1
jax: 0.10.0
libtpu: 0.0.40
codegen_flags: <defaults>
</compile_context>

<pallas_src>
import functools
from dataclasses import dataclass

import numpy as np
import jax
import jax.numpy as jnp
from jax.experimental import pallas as pl
from jax.experimental.pallas import tpu as pltpu


# =============================================================================
# Geometric algebra G(3,0,1), GATr blade ordering:
#   [1, e0, e1, e2, e3, e01, e02, e03, e12, e13, e23, e012, e013, e023, e123, e0123]
# =============================================================================
_GRADE_BLADES = ([0], [1, 2, 3, 4], [5, 6, 7, 8, 9, 10], [11, 12, 13, 14], [15])
_E0_LEFT_MUL = (
    ((0, 1),),
    ((2, 5), (3, 6), (4, 7)),
    ((8, 11), (9, 12), (10, 13)),
    ((14, 15),),
)
# Invariant inner product only involves blades NOT containing e0.
_INNER_MASK_NP = np.array(
    [1, 0, 1, 1, 1, 0, 0, 0, 1, 1, 1, 0, 0, 0, 1, 0], dtype=np.float32
)


def pin_equi_linear_basis() -> np.ndarray:
    """The 9 Pin(3,0,1)-equivariant linear basis maps, shape (9, 16, 16)."""
    mats = []
    for blades in _GRADE_BLADES:  # 5 grade projections
        m = np.zeros((16, 16), np.float32)
        for b in blades:
            m[b, b] = 1.0
        mats.append(m / np.linalg.norm(m))
    for pairs in _E0_LEFT_MUL:  # 4 "multiply-by-e0" maps
        m = np.zeros((16, 16), np.float32)
        for src, dst in pairs:
            m[dst, src] = 1.0
        mats.append(m / np.linalg.norm(m))
    return np.stack(mats)


@dataclass(frozen=True)
class SelfAttentionConfig:
    in_mv_channels: int
    in_s_channels: int
    hidden_mv_channels: int
    hidden_s_channels: int
    num_heads: int
    additional_qk_mv_channels: int = 0
    additional_qk_s_channels: int = 0


def _round_up(x: int, m: int) -> int:
    return ((x + m - 1) // m) * m


# =============================================================================
# Parameters (deterministic synthetic init; shapes follow EquiLinear.__init__)
# =============================================================================
def init_params(key, cfg: SelfAttentionConfig):
    imv = cfg.in_mv_channels + cfg.additional_qk_mv_channels
    is_ = cfg.in_s_channels + cfg.additional_qk_s_channels
    omv = 3 * cfg.hidden_mv_channels * cfg.num_heads
    os_ = 3 * cfg.hidden_s_channels * cfg.num_heads
    ks = jax.random.split(key, 6)
    return dict(
        # equi_linear weight: (out_mv, in_mv, 9 basis elements)
        w_mv=jax.random.normal(ks[0], (omv, imv, 9), jnp.float32) / np.sqrt(9 * imv),
        b_mv=0.1 * jax.random.normal(ks[1], (omv,), jnp.float32),
        # scalars -> scalar blade of output mv
        w_s2mv=jax.random.normal(ks[2], (omv, is_), jnp.float32) / np.sqrt(is_),
        b_s2mv=jnp.zeros((omv,), jnp.float32),
        # scalar blade of input mv -> output scalars
        w_mv2s=jax.random.normal(ks[3], (os_, imv), jnp.float32) / np.sqrt(imv),
        b_mv2s=0.1 * jax.random.normal(ks[4], (os_,), jnp.float32),
        # scalars -> output scalars
        w_s2s=jax.random.normal(ks[5], (os_, is_), jnp.float32) / np.sqrt(is_),
    )


def build_fused_qkv_weights(params):
    """Fold EquiLinear (mv->mv, s->mv, mv->s, s->s, biases) into one (Din, Dout) matrix."""
    basis = jnp.asarray(pin_equi_linear_basis())
    w_mv, b_mv = params["w_mv"], params["b_mv"]
    w_s2mv, b_s2mv = params["w_s2mv"], params["b_s2mv"]
    w_mv2s, b_mv2s = params["w_mv2s"], params["b_mv2s"]
    w_s2s = params["w_s2s"]
    omv, imv, _ = w_mv.shape
    os_, is_ = w_s2s.shape
    e0 = jnp.zeros((16,), jnp.float32).at[0].set(1.0)

    # equi_linear: out[y,i] = sum_{x,j,a} w[y,x,a] basis[a,i,j] in[x,j]
    w_mvmv = jnp.einsum("yxa,aij->yixj", w_mv, basis).reshape(omv * 16, imv * 16)
    w_smv = jnp.einsum("cs,i->cis", w_s2mv, e0).reshape(omv * 16, is_)
    w_mvs = jnp.einsum("ox,j->oxj", w_mv2s, e0).reshape(os_, imv * 16)
    top = jnp.concatenate([w_mvmv, w_smv], axis=1)
    bot = jnp.concatenate([w_mvs, w_s2s], axis=1)
    w_big = jnp.concatenate([top, bot], axis=0)  # (Dout, Din)
    b_mv_full = jnp.einsum("c,i->ci", b_mv + b_s2mv, e0).reshape(omv * 16)
    b_big = jnp.concatenate([b_mv_full, b_mv2s])  # (Dout,)
    return w_big.T, b_big  # (Din, Dout), (Dout,)


def _build_group_matrices(hmv, hs, nh, d_pad, ng_pad):
    """Column<->(qkv,head)-group maps used by the fused norm epilogue.

    amat (d_pad, ng_pad):  column -> group reduction matrix; for mv columns the
                           PGA invariant-inner-product blade mask is folded in.
    g2c  (ng_pad, d_pad):  group -> its columns 0/1 scatter matrix.
    Group g in [0, 3*nh) are mv groups, [3*nh, 6*nh) are scalar groups.
    """
    n_groups = 3 * nh
    d_mv = 3 * hmv * nh * 16
    amat = np.zeros((d_pad, ng_pad), np.float32)
    g2c = np.zeros((ng_pad, d_pad), np.float32)
    for q in range(3):
        for hd in range(nh):
            g_mv = q * nh + hd
            g_s = n_groups + q * nh + hd
            for h in range(hmv):
                base = ((q * hmv + h) * nh + hd) * 16
                for bl in range(16):
                    col = base + bl
                    amat[col, g_mv] = _INNER_MASK_NP[bl]
                    g2c[g_mv, col] = 1.0
            for h in range(hs):
                col = d_mv + (q * hs + h) * nh + hd
                amat[col, g_s] = 1.0
                g2c[g_s, col] = 1.0
    return amat, g2c


def prepare_qkv_constants(params, cfg: SelfAttentionConfig):
    """Built ONCE per parameter set (hoisted out of the forward pass)."""
    w_big, b_big = build_fused_qkv_weights(params)  # (din, dout) f32, (dout,) f32
    din, dout = w_big.shape
    din_p = _round_up(din, 128)     # lane-dense K for the MXU
    d_p = _round_up(dout, 128)      # lane-dense output -> unmasked vst stores
    nh, hmv, hs = cfg.num_heads, cfg.hidden_mv_channels, cfg.hidden_s_channels
    ng = _round_up(2 * 3 * nh, 128)

    w_pad = jnp.zeros((din_p, d_p), jnp.float32).at[:din, :dout].set(w_big)
    b_pad = jnp.zeros((1, d_p), jnp.float32).at[0, :dout].set(b_big)
    amat, g2c = _build_group_matrices(hmv, hs, nh, d_p, ng)
    return dict(
        w=w_pad.astype(jnp.bfloat16),
        bias=b_pad,                                   # keep bias in f32
        amat=jnp.asarray(amat, jnp.bfloat16),
        g2c=jnp.asarray(g2c, jnp.bfloat16),
    )


# =============================================================================
# Fused Pallas kernel: EquiLinear matmul + EquiLayerNorm + scalar LayerNorm
# =============================================================================
def _fused_qkv_kernel(x_ref, w_ref, b_ref, a_ref, g2c_ref, o_ref, *,
                      n_groups, inv_hmv, inv_hs, mv_eps, s_eps):
    # x:   (TM, Din_p)  bf16   item rows (mv blades + scalars, zero padded)
    # w:   (Din_p, D_p) bf16   fused EquiLinear weight
    # b:   (1, D_p)     f32    fused bias
    # a:   (D_p, NG)    bf16   column -> group reduction matrix (mask folded in)
    # g2c: (NG, D_p)    bf16   group -> column 0/1 scatter matrix
    y = jnp.dot(x_ref[...], w_ref[...],
                preferred_element_type=jnp.float32) + b_ref[...]

    ng = a_ref.shape[1]
    g = jax.lax.broadcasted_iota(jnp.int32, (1, ng), 1)
    is_mv_g = g < n_groups
    is_s_g = jnp.logical_and(g >= n_groups, g < 2 * n_groups)

    # Scalar LayerNorm centering: per-(qkv, head) mean over hidden s channels.
    raw_sum = jnp.dot(y.astype(jnp.bfloat16), a_ref[...],
                      preferred_element_type=jnp.float32)
    mean_g = raw_sum * jnp.where(is_s_g, inv_hs, 0.0)
    shift = jnp.dot(mean_g.astype(jnp.bfloat16), g2c_ref[...],
                    preferred_element_type=jnp.float32)
    yc = y - shift                        # mv columns unchanged (shift == 0 there)

    # Per-group second moments: masked |mv|^2 mean (mv groups) and variance
    # (scalar groups; already centered, so no E[x^2]-mean^2 cancellation).
    sq_sum = jnp.dot((yc * yc).astype(jnp.bfloat16), a_ref[...],
                     preferred_element_type=jnp.float32)
    inv_cnt = jnp.where(is_mv_g, inv_hmv, jnp.where(is_s_g, inv_hs, 0.0))
    eps = jnp.where(is_s_g, s_eps, mv_eps)
    r_g = jax.lax.rsqrt(sq_sum * inv_cnt + eps)
    scale = jnp.dot(r_g.astype(jnp.bfloat16), g2c_ref[...],
                    preferred_element_type=jnp.float32)

    o_ref[...] = yc * scale               # padded columns: scale == 0 -> 0


def _pick_row_tile(m_rows: int, tm_max: int = 512) -> int:
    # Big tiles amortize the ~0.35 us per-grid-step overhead and feed the MXU
    # >=128 rows; keep >=2 grid steps when rows allow (v7x: two TensorCores);
    # cap at 512 rows (~3 MB VMEM footprint, safe on all generations).
    tm = min(tm_max, max(128, _round_up(pl.cdiv(m_rows, 2), 128)))
    return min(tm, m_rows)


def _fused_qkv_pallas(x, w, bias, amat, g2c, *, n_groups, hmv, hs, tm):
    m, din_p = x.shape
    d_p = w.shape[1]
    ng = amat.shape[1]
    kern = functools.partial(
        _fused_qkv_kernel, n_groups=n_groups,
        inv_hmv=1.0 / hmv, inv_hs=1.0 / hs, mv_eps=0.01, s_eps=1e-5)
    return pl.pallas_call(
        kern,
        out_shape=jax.ShapeDtypeStruct((m, d_p), jnp.float32),
        grid=(pl.cdiv(m, tm),),
        in_specs=[
            pl.BlockSpec((tm, din_p), lambda i: (i, 0)),
            pl.BlockSpec((din_p, d_p), lambda i: (0, 0)),   # resident, fetched once
            pl.BlockSpec((1, d_p), lambda i: (0, 0)),
            pl.BlockSpec((d_p, ng), lambda i: (0, 0)),
            pl.BlockSpec((ng, d_p), lambda i: (0, 0)),
        ],
        out_specs=pl.BlockSpec((tm, d_p), lambda i: (i, 0)),
        compiler_params=pltpu.CompilerParams(
            dimension_semantics=("parallel",)),
    )(x, w, bias, amat, g2c)


# =============================================================================
# QKVModule forward
# =============================================================================
def qkv_module_forward(inputs, scalars, additional_qk_features_mv,
                       additional_qk_features_s, consts, cfg: SelfAttentionConfig):
    b, n = inputs.shape[:2]
    mv, s = inputs, scalars
    if additional_qk_features_mv is not None:
        mv = jnp.concatenate([mv, additional_qk_features_mv], axis=-2)
    if additional_qk_features_s is not None:
        s = jnp.concatenate([s, additional_qk_features_s], axis=-1)
    # TODO(synk): the scalars=None branch (out_s_channels=None) of the torch module is not implemented.
    imv, is_ = mv.shape[-2], s.shape[-1]
    din = imv * 16 + is_
    din_p = consts["w"].shape[0]

    feats = [mv.reshape(b, n, imv * 16).astype(jnp.float32), s.astype(jnp.float32)]
    if din_p > din:
        feats.append(jnp.zeros((b, n, din_p - din), jnp.float32))
    x = jnp.concatenate(feats, axis=-1).reshape(b * n, din_p).astype(jnp.bfloat16)

    m = b * n
    m_p = _round_up(m, 8)             # sublane alignment only (at most 7 extra rows)
    if m_p > m:
        x = jnp.pad(x, ((0, m_p - m), (0, 0)))

    nh, hmv, hs = cfg.num_heads, cfg.hidden_mv_channels, cfg.hidden_s_channels
    tm = _pick_row_tile(m_p)
    y = _fused_qkv_pallas(x, consts["w"], consts["bias"], consts["amat"],
                          consts["g2c"], n_groups=3 * nh, hmv=hmv, hs=hs, tm=tm)
    y = y[:m]                         # drop row padding (normalized in-kernel)

    d_mv = 3 * hmv * nh * 16
    d_s = 3 * hs * nh
    # rearrange '... items (qkv hidden heads) x -> qkv ... heads items hidden x'
    qkv_mv = y[:, :d_mv].reshape(b, n, 3, hmv, nh, 16).transpose(2, 0, 4, 1, 3, 5)
    qkv_s = y[:, d_mv:d_mv + d_s].reshape(b, n, 3, hs, nh).transpose(2, 0, 4, 1, 3)
    return (qkv_mv[0], qkv_mv[1], qkv_mv[2], qkv_s[0], qkv_s[1], qkv_s[2])


# =============================================================================
# Pure-JAX reference (structured, un-fused, f32) for a numerical sanity check
# =============================================================================
def reference_forward(inputs, scalars, add_mv, add_s, params, cfg):
    basis = jnp.asarray(pin_equi_linear_basis())
    mask = jnp.asarray(_INNER_MASK_NP)
    mv = jnp.concatenate([inputs, add_mv], axis=-2)
    s = jnp.concatenate([scalars, add_s], axis=-1)
    out_mv = jnp.einsum("yxa,aij,bnxj->bnyi", params["w_mv"], basis, mv)
    out_mv = out_mv.at[..., 0].add(params["b_mv"])
    out_mv = out_mv.at[..., 0].add(s @ params["w_s2mv"].T + params["b_s2mv"])
    out_s = mv[..., 0] @ params["w_mv2s"].T + params["b_mv2s"] + s @ params["w_s2s"].T

    b, n = inputs.shape[:2]
    nh, hmv, hs = cfg.num_heads, cfg.hidden_mv_channels, cfg.hidden_s_channels
    qkv_mv = out_mv.reshape(b, n, 3, hmv, nh, 16).transpose(2, 0, 4, 1, 3, 5)
    qkv_s = out_s.reshape(b, n, 3, hs, nh).transpose(2, 0, 4, 1, 3)

    sq = jnp.mean(jnp.sum(qkv_mv * qkv_mv * mask, axis=-1), axis=-1, keepdims=True)
    qkv_mv = qkv_mv / jnp.sqrt(sq[..., None] + 0.01)
    mu = qkv_s.mean(-1, keepdims=True)
    var = ((qkv_s - mu) ** 2).mean(-1, keepdims=True)
    qkv_s = (qkv_s - mu) / jnp.sqrt(var + 1e-5)
    return qkv_mv[0], qkv_mv[1], qkv_mv[2], qkv_s[0], qkv_s[1], qkv_s[2]


if __name__ == "__main__":
    cfg = SelfAttentionConfig(
        in_mv_channels=4,
        in_s_channels=5,
        hidden_mv_channels=4,
        hidden_s_channels=8,
        num_heads=2,
        additional_qk_mv_channels=2,
        additional_qk_s_channels=3,
    )
    B, N = 2, 8
    key = jax.random.PRNGKey(0)
    k_in, k_s, k_amv, k_as, k_p = jax.random.split(key, 5)
    inputs = jax.random.normal(k_in, (B, N, cfg.in_mv_channels, 16), jnp.float32)
    scalars = jax.random.normal(k_s, (B, N, cfg.in_s_channels), jnp.float32)
    add_mv = jax.random.normal(k_amv, (B, N, cfg.additional_qk_mv_channels, 16), jnp.float32)
    add_s = jax.random.normal(k_as, (B, N, cfg.additional_qk_s_channels), jnp.float32)
    params = init_params(k_p, cfg)

    # Hoisted: fused/padded weights and group matrices built once per param set.
    consts = prepare_qkv_constants(params, cfg)
    fwd = jax.jit(functools.partial(qkv_module_forward, cfg=cfg))

    outs = fwd(inputs, scalars, add_mv, add_s, consts)
    outs = jax.block_until_ready(outs)

    refs = reference_forward(inputs, scalars, add_mv, add_s, params, cfg)
    expected_shapes = [
        (B, cfg.num_heads, N, cfg.hidden_mv_channels, 16),
        (B, cfg.num_heads, N, cfg.hidden_mv_channels, 16),
        (B, cfg.num_heads, N, cfg.hidden_mv_channels, 16),
        (B, cfg.num_heads, N, cfg.hidden_s_channels),
        (B, cfg.num_heads, N, cfg.hidden_s_channels),
        (B, cfg.num_heads, N, cfg.hidden_s_channels),
    ]
    # Tolerance accounts for bf16 MXU operands (f32 accumulation) per perf review.
    for o, r, es in zip(outs, refs, expected_shapes):
        assert o.shape == es, (o.shape, es)
        np.testing.assert_allclose(np.asarray(o), np.asarray(r), rtol=2e-2, atol=3e-2)

    print("KERNEL_OK")
</pallas_src>

<mosaic_0001>
module attributes {stable_mosaic.version = 11 : i64} {
  func.func @_fused_qkv_kernel(%arg0: i32, %arg1: memref<16x128xbf16, #tpu.memory_space<vmem>>, %arg2: memref<128x512xbf16, #tpu.memory_space<vmem>>, %arg3: memref<1x512xf32, #tpu.memory_space<vmem>>, %arg4: memref<512x128xbf16, #tpu.memory_space<vmem>>, %arg5: memref<128x512xbf16, #tpu.memory_space<vmem>>, %arg6: memref<16x512xf32, #tpu.memory_space<vmem>>) attributes {dimension_semantics = [#tpu.dimension_semantics<parallel>], iteration_bounds = array<i64: 1>, scalar_prefetch = 0 : i64, scratch_operands = 0 : i64, tpu.core_type = #tpu.core_type<tc>, window_params = [{transform_indices = @transform_0, window_bounds = array<i64: 16, 128>}, {pipeline_mode = #tpu.pipeline_mode<synchronous>, transform_indices = @transform_1, window_bounds = array<i64: 128, 512>}, {pipeline_mode = #tpu.pipeline_mode<synchronous>, transform_indices = @transform_2, window_bounds = array<i64: 1, 512>}, {pipeline_mode = #tpu.pipeline_mode<synchronous>, transform_indices = @transform_3, window_bounds = array<i64: 512, 128>}, {pipeline_mode = #tpu.pipeline_mode<synchronous>, transform_indices = @transform_4, window_bounds = array<i64: 128, 512>}, {transform_indices = @transform_5, window_bounds = array<i64: 16, 512>}]} {
    %c0 = arith.constant 0 : index
    %c0_0 = arith.constant 0 : index
    %0 = vector.load %arg1[%c0, %c0_0] : memref<16x128xbf16, #tpu.memory_space<vmem>>, vector<16x128xbf16>
    %c0_1 = arith.constant 0 : index
    %c0_2 = arith.constant 0 : index
    %1 = vector.load %arg2[%c0_1, %c0_2] : memref<128x512xbf16, #tpu.memory_space<vmem>>, vector<128x512xbf16>
    %cst = arith.constant dense<0.000000e+00> : vector<16x512xf32>
    %2 = tpu.matmul %0, %1, %cst {dimension_numbers = #tpu.dot_dimension_numbers<[1], [0], [0], [1], [0, 0, 1, 1], [], []>} : vector<16x128xbf16>, vector<128x512xbf16>, vector<16x512xf32> -> vector<16x512xf32>
    %c0_3 = arith.constant 0 : index
    %c0_4 = arith.constant 0 : index
    %3 = vector.load %arg3[%c0_3, %c0_4] : memref<1x512xf32, #tpu.memory_space<vmem>>, vector<1x512xf32>
    %4 = vector.broadcast %3 : vector<1x512xf32> to vector<16x512xf32>
    %5 = arith.addf %2, %4 : vector<16x512xf32>
    %6 = tpu.iota {dimensions = array<i32: 1>} : vector<1x128xi32>
    %c6_i32 = arith.constant 6 : i32
    %7 = vector.broadcast %c6_i32 : i32 to vector<1x128xi32>
    %8 = arith.cmpi slt, %6, %7 : vector<1x128xi32>
    %c6_i32_5 = arith.constant 6 : i32
    %9 = vector.broadcast %c6_i32_5 : i32 to vector<1x128xi32>
    %10 = arith.cmpi sge, %6, %9 : vector<1x128xi32>
    %c12_i32 = arith.constant 12 : i32
    %11 = vector.broadcast %c12_i32 : i32 to vector<1x128xi32>
    %12 = arith.cmpi slt, %6, %11 : vector<1x128xi32>
    %13 = arith.andi %10, %12 : vector<1x128xi1>
    %14 = arith.truncf %5 : vector<16x512xf32> to vector<16x512xbf16>
    %c0_6 = arith.constant 0 : index
    %c0_7 = arith.constant 0 : index
    %15 = vector.load %arg4[%c0_6, %c0_7] : memref<512x128xbf16, #tpu.memory_space<vmem>>, vector<512x128xbf16>
    %cst_8 = arith.constant dense<0.000000e+00> : vector<16x128xf32>
    %16 = tpu.matmul %14, %15, %cst_8 {dimension_numbers = #tpu.dot_dimension_numbers<[1], [0], [0], [1], [0, 0, 1, 1], [], []>} : vector<16x512xbf16>, vector<512x128xbf16>, vector<16x128xf32> -> vector<16x128xf32>
    %cst_9 = arith.constant 1.250000e-01 : f32
    %cst_10 = arith.constant 0.000000e+00 : f32
    %17 = vector.broadcast %cst_9 : f32 to vector<1x128xf32>
    %18 = vector.broadcast %cst_10 : f32 to vector<1x128xf32>
    %19 = arith.select %13, %17, %18 : vector<1x128xi1>, vector<1x128xf32>
    %20 = vector.broadcast %19 : vector<1x128xf32> to vector<16x128xf32>
    %21 = arith.mulf %16, %20 : vector<16x128xf32>
    %22 = arith.truncf %21 : vector<16x128xf32> to vector<16x128xbf16>
    %c0_11 = arith.constant 0 : index
    %c0_12 = arith.constant 0 : index
    %23 = vector.load %arg5[%c0_11, %c0_12] : memref<128x512xbf16, #tpu.memory_space<vmem>>, vector<128x512xbf16>
    %cst_13 = arith.constant dense<0.000000e+00> : vector<16x512xf32>
    %24 = tpu.matmul %22, %23, %cst_13 {dimension_numbers = #tpu.dot_dimension_numbers<[1], [0], [0], [1], [0, 0, 1, 1], [], []>} : vector<16x128xbf16>, vector<128x512xbf16>, vector<16x512xf32> -> vector<16x512xf32>
    %25 = arith.subf %5, %24 : vector<16x512xf32>
    %26 = arith.mulf %25, %25 : vector<16x512xf32>
    %27 = arith.truncf %26 : vector<16x512xf32> to vector<16x512xbf16>
    %c0_14 = arith.constant 0 : index
    %c0_15 = arith.constant 0 : index
    %28 = vector.load %arg4[%c0_14, %c0_15] : memref<512x128xbf16, #tpu.memory_space<vmem>>, vector<512x128xbf16>
    %cst_16 = arith.constant dense<0.000000e+00> : vector<16x128xf32>
    %29 = tpu.matmul %27, %28, %cst_16 {dimension_numbers = #tpu.dot_dimension_numbers<[1], [0], [0], [1], [0, 0, 1, 1], [], []>} : vector<16x512xbf16>, vector<512x128xbf16>, vector<16x128xf32> -> vector<16x128xf32>
    %cst_17 = arith.constant 1.250000e-01 : f32
    %cst_18 = arith.constant 0.000000e+00 : f32
    %30 = vector.broadcast %cst_17 : f32 to vector<1x128xf32>
    %31 = vector.broadcast %cst_18 : f32 to vector<1x128xf32>
    %32 = arith.select %13, %30, %31 : vector<1x128xi1>, vector<1x128xf32>
    %cst_19 = arith.constant 2.500000e-01 : f32
    %33 = vector.broadcast %cst_19 : f32 to vector<1x128xf32>
    %34 = arith.select %8, %33, %32 : vector<1x128xi1>, vector<1x128xf32>
    %cst_20 = arith.constant 9.99999974E-6 : f32
    %cst_21 = arith.constant 0.00999999977 : f32
    %35 = vector.broadcast %cst_20 : f32 to vector<1x128xf32>
    %36 = vector.broadcast %cst_21 : f32 to vector<1x128xf32>
    %37 = arith.select %13, %35, %36 : vector<1x128xi1>, vector<1x128xf32>
    %38 = vector.broadcast %34 : vector<1x128xf32> to vector<16x128xf32>
    %39 = arith.mulf %29, %38 : vector<16x128xf32>
    %40 = vector.broadcast %37 : vector<1x128xf32> to vector<16x128xf32>
    %41 = arith.addf %39, %40 : vector<16x128xf32>
    %42 = math.rsqrt %41 : vector<16x128xf32>
    %43 = arith.truncf %42 : vector<16x128xf32> to vector<16x128xbf16>
    %c0_22 = arith.constant 0 : index
    %c0_23 = arith.constant 0 : index
    %44 = vector.load %arg5[%c0_22, %c0_23] : memref<128x512xbf16, #tpu.memory_space<vmem>>, vector<128x512xbf16>
    %cst_24 = arith.constant dense<0.000000e+00> : vector<16x512xf32>
    %45 = tpu.matmul %43, %44, %cst_24 {dimension_numbers = #tpu.dot_dimension_numbers<[1], [0], [0], [1], [0, 0, 1, 1], [], []>} : vector<16x128xbf16>, vector<128x512xbf16>, vector<16x512xf32> -> vector<16x512xf32>
    %46 = arith.mulf %25, %45 : vector<16x512xf32>
    %c0_25 = arith.constant 0 : index
    %c0_26 = arith.constant 0 : index
    %47 = vector.load %arg6[%c0_25, %c0_26] : memref<16x512xf32, #tpu.memory_space<vmem>>, vector<16x512xf32>
    tpu.vector_store %arg6[%c0_25, %c0_26], %46 {strides = array<i32>} : memref<16x512xf32, #tpu.memory_space<vmem>>, vector<16x512xf32>,
    return
  }
  func.func @transform_0(%arg0: i32) -> (i32, i32) {
    %c0_i32 = arith.constant 0 : i32
    %c0_i32_0 = arith.constant 0 : i32
    return %arg0, %c0_i32 : i32, i32
  }
  func.func @transform_1(%arg0: i32) -> (i32, i32) {
    %c0_i32 = arith.constant 0 : i32
    %c0_i32_0 = arith.constant 0 : i32
    %c0_i32_1 = arith.constant 0 : i32
    return %c0_i32, %c0_i32_0 : i32, i32
  }
  func.func @transform_2(%arg0: i32) -> (i32, i32) {
    %c0_i32 = arith.constant 0 : i32
    %c0_i32_0 = arith.constant 0 : i32
    %c0_i32_1 = arith.constant 0 : i32
    return %c0_i32, %c0_i32_0 : i32, i32
  }
  func.func @transform_3(%arg0: i32) -> (i32, i32) {
    %c0_i32 = arith.constant 0 : i32
    %c0_i32_0 = arith.constant 0 : i32
    %c0_i32_1 = arith.constant 0 : i32
    return %c0_i32, %c0_i32_0 : i32, i32
  }
  func.func @transform_4(%arg0: i32) -> (i32, i32) {
    %c0_i32 = arith.constant 0 : i32
    %c0_i32_0 = arith.constant 0 : i32
    %c0_i32_1 = arith.constant 0 : i32
    return %c0_i32, %c0_i32_0 : i32, i32
  }
  func.func @transform_5(%arg0: i32) -> (i32, i32) {
    %c0_i32 = arith.constant 0 : i32
    %c0_i32_0 = arith.constant 0 : i32
    return %arg0, %c0_i32 : i32, i32
  }
}

</mosaic_0001>

<llo_original>
// kernel: qkv_module_forward.1
$region0: #{qkv_module_forward.1}
  #allocation0 [shape = 'u32[]', space=smem, size = 0x4, offset = 0x4, fixed_abs, tag = 'smem constant byte address 0x4 - core index']
  #allocation1 [shape = 'u32[144,128]{1,0:T(1,128)}', space=vmem, size = 0x12000, scoped, tag = 'internal scratch']
  %s0 = inlined_call_operand.vmem [shape: bf16[16,128], index: 0, kind: input, shape index: {}]
  %s1 = inlined_call_operand.vmem [shape: bf16[128,512], index: 1, kind: input, shape index: {}]
  %s2 = inlined_call_operand.vmem [shape: f32[1,512], index: 2, kind: input, shape index: {}]
  %s3 = inlined_call_operand.hbm [shape: bf16[512,128], index: 3, kind: input, shape index: {}]
  %s4 = inlined_call_operand.hbm [shape: bf16[128,512], index: 4, kind: input, shape index: {}]
  %s5 = inlined_call_operand.vmem [shape: f32[16,512], index: 5, kind: output, shape index: {}]
  %s6 = sld [smem:[#allocation0]]
  $region38: #{qkv_module_forward.1} parent=0
    _
  %s8 = ssub.s32 1, %s6
  %s9 = scalar_select 0, %s8, %s6
  $region1: #{qkv_module_forward.1} parent=0
    #allocation2 [shape = 'u8[131072]{0}', space=vmem, size = 0x20000, scoped, tag = 'input window, operand 3, single buffered']
    #allocation3 [shape = 's32[1]{0}', space=sflag, size = 0x4, scoped, tag = 'scoped memory for qkv_module_forward.1']
    #allocation4 [shape = 'u8[131072]{0}', space=vmem, size = 0x20000, scoped, tag = 'input window, operand 4, single buffered']
    #allocation5 [shape = 's32[1]{0}', space=sflag, size = 0x4, scoped, tag = 'scoped memory for qkv_module_forward.1']
    %10 = vsyncpa [#allocation3], 0
    %11 = vsyncpa [#allocation5], 0
    // Predicated region
    $region2: #{qkv_module_forward.1} parent=1 // pred_check
      _
    $region3: #{qkv_module_forward.1} parent=1 // pred_check_branch
      %13 = sbr.rel (0) target = $region5
    $region4: #{qkv_module_forward.1} parent=1 // pred_region
      _
    $region5: #{qkv_module_forward.1} parent=1 // pred_fallthru
      _
    // Predicated region
    $region6: #{qkv_module_forward.1} parent=1 // pred_check
      _
    $region7: #{qkv_module_forward.1} parent=1 // pred_check_branch
      %15 = sbr.rel (0) target = $region9
    $region8: #{qkv_module_forward.1} parent=1 // pred_region
      _
    $region9: #{qkv_module_forward.1} parent=1 // pred_fallthru
      _
    // Predicated region
    $region10: #{qkv_module_forward.1} parent=1 // pred_check
      _
    $region11: #{qkv_module_forward.1} parent=1 // pred_check_branch
      %17 = sbr.rel (0) target = $region13
    $region12: #{qkv_module_forward.1} parent=1 // pred_region
      _
    $region13: #{qkv_module_forward.1} parent=1 // pred_fallthru
      _
    // Predicated region
    $region14: #{qkv_module_forward.1} parent=1 // pred_check
      _
    $region15: #{qkv_module_forward.1} parent=1 // pred_check_branch
      %19 = sbr.rel (0) target = $region17
    $region16: #{qkv_module_forward.1} parent=1 // pred_region
      %s21 = ssub.s32 4096, 4096
      %22 = vsyncadd [#allocation3], %s21
      %s23 = sshll.u32 [#allocation2], 4
      %s24 = int_to_ptr.vmem [resolvable:$true] %s23
      %29 = dma.hbm_to_vmem [thread:$0]  %s3, 4096, %s24, [#allocation3], 64, 64, 4
    $region17: #{qkv_module_forward.1} parent=1 // pred_fallthru
      _
    // Predicated region
    $region18: #{qkv_module_forward.1} parent=1 // pred_check
      _
    $region19: #{qkv_module_forward.1} parent=1 // pred_check_branch
      %31 = sbr.rel (0) target = $region21
    $region20: #{qkv_module_forward.1} parent=1 // pred_region
      %s33 = ssub.s32 4096, 4096
      %34 = vsyncadd [#allocation5], %s33
      %s35 = sshll.u32 [#allocation4], 4
      %s36 = int_to_ptr.vmem [resolvable:$true] %s35
      %41 = dma.hbm_to_vmem [thread:$0]  %s4, 4096, %s36, [#allocation5], 256, 256, 16
    $region21: #{qkv_module_forward.1} parent=1 // pred_fallthru
      _
    // Predicated region
    $region22: #{qkv_module_forward.1} parent=1 // pred_check
      _
    $region23: #{qkv_module_forward.1} parent=1 // pred_check_branch
      %43 = sbr.rel (0) target = $region25
    $region24: #{qkv_module_forward.1} parent=1 // pred_region
      %44 = dma.done [#allocation3], 4096
    $region25: #{qkv_module_forward.1} parent=1 // pred_fallthru
      _
    // Predicated region
    $region26: #{qkv_module_forward.1} parent=1 // pred_check
      _
    $region27: #{qkv_module_forward.1} parent=1 // pred_check_branch
      %46 = sbr.rel (0) target = $region29
    $region28: #{qkv_module_forward.1} parent=1 // pred_region
      %47 = dma.done [#allocation5], 4096
    $region29: #{qkv_module_forward.1} parent=1 // pred_fallthru
      _
    %v49 = vld [vmem:[%s0] sm:$0xf]
    %v50 = vld [vmem:[%s0 + $0x4] sm:$0xf]
    %v51 = vld [vmem:[%s1] sm:$0xff]
    %v52 = vld [vmem:[%s1 + $0x8] sm:$0xff]
    %v53 = vld [vmem:[%s1 + $0x10] sm:$0xff]
    %v54 = vld [vmem:[%s1 + $0x18] sm:$0xff]
    %v55 = vld [vmem:[%s1 + $0x20] sm:$0xff]
    %v56 = vld [vmem:[%s1 + $0x28] sm:$0xff]
    %v57 = vld [vmem:[%s1 + $0x30] sm:$0xff]
    %v58 = vld [vmem:[%s1 + $0x38] sm:$0xff]
    %v59 = vld [vmem:[%s1 + $0x40] sm:$0xff]
    %v60 = vld [vmem:[%s1 + $0x48] sm:$0xff]
    %v61 = vld [vmem:[%s1 + $0x50] sm:$0xff]
    %v62 = vld [vmem:[%s1 + $0x58] sm:$0xff]
    %v63 = vld [vmem:[%s1 + $0x60] sm:$0xff]
    %v64 = vld [vmem:[%s1 + $0x68] sm:$0xff]
    %v65 = vld [vmem:[%s1 + $0x70] sm:$0xff]
    %v66 = vld [vmem:[%s1 + $0x78] sm:$0xff]
    %v67 = vld [vmem:[%s1 + $0x80] sm:$0xff]
    %v68 = vld [vmem:[%s1 + $0x88] sm:$0xff]
    %v69 = vld [vmem:[%s1 + $0x90] sm:$0xff]
    %v70 = vld [vmem:[%s1 + $0x98] sm:$0xff]
    %v71 = vld [vmem:[%s1 + $0xa0] sm:$0xff]
    %v72 = vld [vmem:[%s1 + $0xa8] sm:$0xff]
    %v73 = vld [vmem:[%s1 + $0xb0] sm:$0xff]
    %v74 = vld [vmem:[%s1 + $0xb8] sm:$0xff]
    %v75 = vld [vmem:[%s1 + $0xc0] sm:$0xff]
    %v76 = vld [vmem:[%s1 + $0xc8] sm:$0xff]
    %v77 = vld [vmem:[%s1 + $0xd0] sm:$0xff]
    %v78 = vld [vmem:[%s1 + $0xd8] sm:$0xff]
    %v79 = vld [vmem:[%s1 + $0xe0] sm:$0xff]
    %v80 = vld [vmem:[%s1 + $0xe8] sm:$0xff]
    %v81 = vld [vmem:[%s1 + $0xf0] sm:$0xff]
    %v82 = vld [vmem:[%s1 + $0xf8] sm:$0xff]
    %v83 = vld [vmem:[%s2] sm:$0xf]
    %v85 = vlaneseq
    %v86 = vshrl.u32 %v85, 7
    %v87 = vsub.s32 0, %v86
    %v88 = vrot.slane %v83, %v87
    %v89 = vlaneseq
    %v90 = vshrl.u32 %v89, 7
    %v91 = vsub.s32 1, %v90
    %v92 = vrot.slane %v83, %v91
    %v93 = vlaneseq
    %v94 = vshrl.u32 %v93, 7
    %v95 = vsub.s32 2, %v94
    %v96 = vrot.slane %v83, %v95
    %v97 = vlaneseq
    %v98 = vshrl.u32 %v97, 7
    %v99 = vsub.s32 3, %v98
    %v100 = vrot.slane %v83, %v99
    %v107 = vunpack.c.l.b16 %v49
    %v108 = vunpack.c.l.b16 %v50
    %v109 = vpack.c.b16 %v108, %v107
    %v143 = vunpack.c.l.b16 %v51
    %v144 = vunpack.c.h.b16 %v51
    %v145 = vunpack.c.l.b16 %v52
    %v146 = vunpack.c.h.b16 %v52
    %v147 = vunpack.c.l.b16 %v53
    %v148 = vunpack.c.h.b16 %v53
    %v149 = vunpack.c.l.b16 %v54
    %v150 = vunpack.c.h.b16 %v54
    %v151 = vunpack.c.l.b16 %v55
    %v152 = vunpack.c.h.b16 %v55
    %v153 = vunpack.c.l.b16 %v56
    %v154 = vunpack.c.h.b16 %v56
    %v155 = vunpack.c.l.b16 %v57
    %v156 = vunpack.c.h.b16 %v57
    %v157 = vunpack.c.l.b16 %v58
    %v158 = vunpack.c.h.b16 %v58
    %v159 = vunpack.c.l.b16 %v59
    %v160 = vunpack.c.h.b16 %v59
    %v161 = vunpack.c.l.b16 %v60
    %v162 = vunpack.c.h.b16 %v60
    %v163 = vunpack.c.l.b16 %v61
    %v164 = vunpack.c.h.b16 %v61
    %v165 = vunpack.c.l.b16 %v62
    %v166 = vunpack.c.h.b16 %v62
    %v167 = vunpack.c.l.b16 %v63
    %v168 = vunpack.c.h.b16 %v63
    %v169 = vunpack.c.l.b16 %v64
    %v170 = vunpack.c.h.b16 %v64
    %v171 = vunpack.c.l.b16 %v65
    %v172 = vunpack.c.h.b16 %v65
    %v173 = vunpack.c.l.b16 %v66
    %v174 = vunpack.c.h.b16 %v66
    %v175 = vunpack.c.l.b16 %v67
    %v176 = vunpack.c.h.b16 %v67
    %v177 = vunpack.c.l.b16 %v68
    %v178 = vunpack.c.h.b16 %v68
    %v179 = vunpack.c.l.b16 %v69
    %v180 = vunpack.c.h.b16 %v69
    %v181 = vunpack.c.l.b16 %v70
    %v182 = vunpack.c.h.b16 %v70
    %v183 = vunpack.c.l.b16 %v71
    %v184 = vunpack.c.h.b16 %v71
    %v185 = vunpack.c.l.b16 %v72
    %v186 = vunpack.c.h.b16 %v72
    %v187 = vunpack.c.l.b16 %v73
    %v188 = vunpack.c.h.b16 %v73
    %v189 = vunpack.c.l.b16 %v74
    %v190 = vunpack.c.h.b16 %v74
    %v191 = vunpack.c.l.b16 %v75
    %v192 = vunpack.c.h.b16 %v75
    %v193 = vunpack.c.l.b16 %v76
    %v194 = vunpack.c.h.b16 %v76
    %v195 = vunpack.c.l.b16 %v77
    %v196 = vunpack.c.h.b16 %v77
    %v197 = vunpack.c.l.b16 %v78
    %v198 = vunpack.c.h.b16 %v78
    %v199 = vunpack.c.l.b16 %v79
    %v200 = vunpack.c.h.b16 %v79
    %v201 = vunpack.c.l.b16 %v80
    %v202 = vunpack.c.h.b16 %v80
    %v203 = vunpack.c.l.b16 %v81
    %v204 = vunpack.c.h.b16 %v81
    %v205 = vunpack.c.l.b16 %v82
    %v206 = vunpack.c.h.b16 %v82
    %v207 = vpack.c.b16 %v147, %v143
    %v208 = vpack.c.b16 %v148, %v144
    %v209 = vpack.c.b16 %v149, %v145
    %v210 = vpack.c.b16 %v150, %v146
    %v211 = vpack.c.b16 %v155, %v151
    %v212 = vpack.c.b16 %v156, %v152
    %v213 = vpack.c.b16 %v157, %v153
    %v214 = vpack.c.b16 %v158, %v154
    %v215 = vpack.c.b16 %v163, %v159
    %v216 = vpack.c.b16 %v164, %v160
    %v217 = vpack.c.b16 %v165, %v161
    %v218 = vpack.c.b16 %v166, %v162
    %v219 = vpack.c.b16 %v171, %v167
    %v220 = vpack.c.b16 %v172, %v168
    %v221 = vpack.c.b16 %v173, %v169
    %v222 = vpack.c.b16 %v174, %v170
    %v223 = vpack.c.b16 %v179, %v175
    %v224 = vpack.c.b16 %v180, %v176
    %v225 = vpack.c.b16 %v181, %v177
    %v226 = vpack.c.b16 %v182, %v178
    %v227 = vpack.c.b16 %v187, %v183
    %v228 = vpack.c.b16 %v188, %v184
    %v229 = vpack.c.b16 %v189, %v185
    %v230 = vpack.c.b16 %v190, %v186
    %v231 = vpack.c.b16 %v195, %v191
    %v232 = vpack.c.b16 %v196, %v192
    %v233 = vpack.c.b16 %v197, %v193
    %v234 = vpack.c.b16 %v198, %v194
    %v235 = vpack.c.b16 %v203, %v199
    %v236 = vpack.c.b16 %v204, %v200
    %v237 = vpack.c.b16 %v205, %v201
    %v238 = vpack.c.b16 %v206, %v202
    %271 = vmatprep.subr.bf16.mxu0 %v208
    %272 = vmatpush1.bf16.msra.mxu0 %v207
    %273 = vmatprep.subr.bf16.mxu0 %v212
    %274 = vmatpush1.bf16.msra.mxu0 %v211
    %275 = vmatprep.subr.bf16.mxu0 %v216
    %276 = vmatpush1.bf16.msra.mxu0 %v215
    %277 = vmatprep.subr.bf16.mxu0 %v220
    %278 = vmatpush1.bf16.msra.mxu0 %v219
    %279 = vmatprep.subr.bf16.mxu0 %v224
    %280 = vmatpush1.bf16.msra.mxu0 %v223
    %281 = vmatprep.subr.bf16.mxu0 %v228
    %282 = vmatpush1.bf16.msra.mxu0 %v227
    %283 = vmatprep.subr.bf16.mxu0 %v232
    %284 = vmatpush1.bf16.msra.mxu0 %v231
    %285 = vmatprep.subr.bf16.mxu0 %v236
    %286 = vmatpush1.bf16.msra.mxu0 %v235
    %287 = vmatprep.subr.bf16.mxu0 0
    %288 = vmatpush1.bf16.msra.mxu0 0
    %289 = vmatprep.subr.bf16.mxu0 0
    %290 = vmatpush1.bf16.msra.mxu0 0
    %291 = vmatprep.subr.bf16.mxu0 0
    %292 = vmatpush1.bf16.msra.mxu0 0
    %293 = vmatprep.subr.bf16.mxu0 0
    %294 = vmatpush1.bf16.msra.mxu0 0
    %295 = vmatprep.subr.bf16.mxu0 0
    %296 = vmatpush1.bf16.msra.mxu0 0
    %297 = vmatprep.subr.bf16.mxu0 0
    %298 = vmatpush1.bf16.msra.mxu0 0
    %299 = vmatprep.subr.bf16.mxu0 0
    %300 = vmatpush1.bf16.msra.mxu0 0
    %301 = vmatprep.subr.bf16.mxu0 0
    %302 = vmatpush1.bf16.msra.mxu0 0
    %303 = vmatprep.mubr.bf16.mxu0 0
    %304 = vmatmul.mubr.bf16.gmra.mrb[0].mxu0 %v109
    %v305 = vpop.f32.mrb[0].mxu0
    %v306 = vadd.f32 %v88, %v305
    %v307 = vpop.f32.mrb[0].mxu0
    %v308 = vadd.f32 %v92, %v307
    %v309 = vpop.f32.mrb[0].mxu0
    %v310 = vadd.f32 %v88, %v309
    %v311 = vpop.f32.mrb[0].mxu0
    %v312 = vadd.f32 %v92, %v311
    %313 = vdwg.mxu0
    %314 = vmatprep.subr.bf16.mxu0 %v210
    %315 = vmatpush1.bf16.msra.mxu0 %v209
    %316 = vmatprep.subr.bf16.mxu0 %v214
    %317 = vmatpush1.bf16.msra.mxu0 %v213
    %318 = vmatprep.subr.bf16.mxu0 %v218
    %319 = vmatpush1.bf16.msra.mxu0 %v217
    %320 = vmatprep.subr.bf16.mxu0 %v222
    %321 = vmatpush1.bf16.msra.mxu0 %v221
    %322 = vmatprep.subr.bf16.mxu0 %v226
    %323 = vmatpush1.bf16.msra.mxu0 %v225
    %324 = vmatprep.subr.bf16.mxu0 %v230
    %325 = vmatpush1.bf16.msra.mxu0 %v229
    %326 = vmatprep.subr.bf16.mxu0 %v234
    %327 = vmatpush1.bf16.msra.mxu0 %v233
    %328 = vmatprep.subr.bf16.mxu0 %v238
    %329 = vmatpush1.bf16.msra.mxu0 %v237
    %330 = vmatprep.subr.bf16.mxu0 0
    %331 = vmatpush1.bf16.msra.mxu0 0
    %332 = vmatprep.subr.bf16.mxu0 0
    %333 = vmatpush1.bf16.msra.mxu0 0
    %334 = vmatprep.subr.bf16.mxu0 0
    %335 = vmatpush1.bf16.msra.mxu0 0
    %336 = vmatprep.subr.bf16.mxu0 0
    %337 = vmatpush1.bf16.msra.mxu0 0
    %338 = vmatprep.subr.bf16.mxu0 0
    %339 = vmatpush1.bf16.msra.mxu0 0
    %340 = vmatprep.subr.bf16.mxu0 0
    %341 = vmatpush1.bf16.msra.mxu0 0
    %342 = vmatprep.subr.bf16.mxu0 0
    %343 = vmatpush1.bf16.msra.mxu0 0
    %344 = vmatprep.subr.bf16.mxu0 0
    %345 = vmatpush1.bf16.msra.mxu0 0
    %346 = vmatprep.mubr.bf16.mxu0 0
    %347 = vmatmul.mubr.bf16.gmra.mrb[0].mxu0 %v109
    %v348 = vpop.f32.mrb[0].mxu0
    %v349 = vadd.f32 %v96, %v348
    %v350 = vpop.f32.mrb[0].mxu0
    %v351 = vadd.f32 %v100, %v350
    %v352 = vpop.f32.mrb[0].mxu0
    %v353 = vadd.f32 %v96, %v352
    %v354 = vpop.f32.mrb[0].mxu0
    %v355 = vadd.f32 %v100, %v354
    %356 = vdwg.mxu0
    %v357 = vlaneseq
    %v358 = vand.u32 %v357, 127
    %vm359 = vcmp.lt.s32.totalorder %v358, 6
    %vm360 = vcmp.ge.s32.totalorder %v358, 6
    %vm361 = vcmp.lt.s32.totalorder %v358, 12
    %vm362 = vmand %vm360, %vm361
    %v363 = vpack.c.bf16 %v310, %v306
    %v364 = vpack.c.bf16 %v312, %v308
    %v365 = vpack.c.bf16 %v353, %v349
    %v366 = vpack.c.bf16 %v355, %v351
    %v367 = vld [vmem:[#allocation2] sm:$0xf]
    %v368 = vld [vmem:[#allocation2 + $0x4] sm:$0xf]
    %v369 = vld [vmem:[#allocation2 + $0x8] sm:$0xf]
    %v370 = vld [vmem:[#allocation2 + $0xc] sm:$0xf]
    %v371 = vld [vmem:[#allocation2 + $0x10] sm:$0xf]
    %v372 = vld [vmem:[#allocation2 + $0x14] sm:$0xf]
    %v373 = vld [vmem:[#allocation2 + $0x18] sm:$0xf]
    %v374 = vld [vmem:[#allocation2 + $0x1c] sm:$0xf]
    %v375 = vld [vmem:[#allocation2 + $0x20] sm:$0xf]
    %v376 = vld [vmem:[#allocation2 + $0x24] sm:$0xf]
    %v377 = vld [vmem:[#allocation2 + $0x28] sm:$0xf]
    %v378 = vld [vmem:[#allocation2 + $0x2c] sm:$0xf]
    %v379 = vld [vmem:[#allocation2 + $0x30] sm:$0xf]
    %v380 = vld [vmem:[#allocation2 + $0x34] sm:$0xf]
    %v381 = vld [vmem:[#allocation2 + $0x38] sm:$0xf]
    %v382 = vld [vmem:[#allocation2 + $0x3c] sm:$0xf]
    %v383 = vld [vmem:[#allocation2 + $0x40] sm:$0xf]
    %v384 = vld [vmem:[#allocation2 + $0x44] sm:$0xf]
    %v385 = vld [vmem:[#allocation2 + $0x48] sm:$0xf]
    %v386 = vld [vmem:[#allocation2 + $0x4c] sm:$0xf]
    %v387 = vld [vmem:[#allocation2 + $0x50] sm:$0xf]
    %v388 = vld [vmem:[#allocation2 + $0x54] sm:$0xf]
    %v389 = vld [vmem:[#allocation2 + $0x58] sm:$0xf]
    %v390 = vld [vmem:[#allocation2 + $0x5c] sm:$0xf]
    %v391 = vld [vmem:[#allocation2 + $0x60] sm:$0xf]
    %v392 = vld [vmem:[#allocation2 + $0x64] sm:$0xf]
    %v393 = vld [vmem:[#allocation2 + $0x68] sm:$0xf]
    %v394 = vld [vmem:[#allocation2 + $0x6c] sm:$0xf]
    %v395 = vld [vmem:[#allocation2 + $0x70] sm:$0xf]
    %v396 = vld [vmem:[#allocation2 + $0x74] sm:$0xf]
    %v397 = vld [vmem:[#allocation2 + $0x78] sm:$0xf]
    %v398 = vld [vmem:[#allocation2 + $0x7c] sm:$0xf]
    %v399 = vld [vmem:[#allocation2 + $0x80] sm:$0xf]
    %v400 = vld [vmem:[#allocation2 + $0x84] sm:$0xf]
    %v401 = vld [vmem:[#allocation2 + $0x88] sm:$0xf]
    %v402 = vld [vmem:[#allocation2 + $0x8c] sm:$0xf]
    %v403 = vld [vmem:[#allocation2 + $0x90] sm:$0xf]
    %v404 = vld [vmem:[#allocation2 + $0x94] sm:$0xf]
    %v405 = vld [vmem:[#allocation2 + $0x98] sm:$0xf]
    %v406 = vld [vmem:[#allocation2 + $0x9c] sm:$0xf]
    %v407 = vld [vmem:[#allocation2 + $0xa0] sm:$0xf]
    %v408 = vld [vmem:[#allocation2 + $0xa4] sm:$0xf]
    %v409 = vld [vmem:[#allocation2 + $0xa8] sm:$0xf]
    %v410 = vld [vmem:[#allocation2 + $0xac] sm:$0xf]
    %v411 = vld [vmem:[#allocation2 + $0xb0] sm:$0xf]
    %v412 = vld [vmem:[#allocation2 + $0xb4] sm:$0xf]
    %v413 = vld [vmem:[#allocation2 + $0xb8] sm:$0xf]
    %v414 = vld [vmem:[#allocation2 + $0xbc] sm:$0xf]
    %v415 = vld [vmem:[#allocation2 + $0xc0] sm:$0xf]
    %v416 = vld [vmem:[#allocation2 + $0xc4] sm:$0xf]
    %v417 = vld [vmem:[#allocation2 + $0xc8] sm:$0xf]
    %v418 = vld [vmem:[#allocation2 + $0xcc] sm:$0xf]
    %v419 = vld [vmem:[#allocation2 + $0xd0] sm:$0xf]
    %v420 = vld [vmem:[#allocation2 + $0xd4] sm:$0xf]
    %v421 = vld [vmem:[#allocation2 + $0xd8] sm:$0xf]
    %v422 = vld [vmem:[#allocation2 + $0xdc] sm:$0xf]
    %v423 = vld [vmem:[#allocation2 + $0xe0] sm:$0xf]
    %v424 = vld [vmem:[#allocation2 + $0xe4] sm:$0xf]
    %v425 = vld [vmem:[#allocation2 + $0xe8] sm:$0xf]
    %v426 = vld [vmem:[#allocation2 + $0xec] sm:$0xf]
    %v427 = vld [vmem:[#allocation2 + $0xf0] sm:$0xf]
    %v428 = vld [vmem:[#allocation2 + $0xf4] sm:$0xf]
    %v429 = vld [vmem:[#allocation2 + $0xf8] sm:$0xf]
    %v430 = vld [vmem:[#allocation2 + $0xfc] sm:$0xf]
    %v495 = vunpack.c.l.b16 %v367
    %v496 = vunpack.c.l.b16 %v368
    %v497 = vunpack.c.l.b16 %v369
    %v498 = vunpack.c.l.b16 %v370
    %v499 = vunpack.c.l.b16 %v371
    %v500 = vunpack.c.l.b16 %v372
    %v501 = vunpack.c.l.b16 %v373
    %v502 = vunpack.c.l.b16 %v374
    %v503 = vunpack.c.l.b16 %v375
    %v504 = vunpack.c.l.b16 %v376
    %v505 = vunpack.c.l.b16 %v377
    %v506 = vunpack.c.l.b16 %v378
    %v507 = vunpack.c.l.b16 %v379
    %v508 = vunpack.c.l.b16 %v380
    %v509 = vunpack.c.l.b16 %v381
    %v510 = vunpack.c.l.b16 %v382
    %v511 = vunpack.c.l.b16 %v383
    %v512 = vunpack.c.l.b16 %v384
    %v513 = vunpack.c.l.b16 %v385
    %v514 = vunpack.c.l.b16 %v386
    %v515 = vunpack.c.l.b16 %v387
    %v516 = vunpack.c.l.b16 %v388
    %v517 = vunpack.c.l.b16 %v389
    %v518 = vunpack.c.l.b16 %v390
    %v519 = vunpack.c.l.b16 %v391
    %v520 = vunpack.c.l.b16 %v392
    %v521 = vunpack.c.l.b16 %v393
    %v522 = vunpack.c.l.b16 %v394
    %v523 = vunpack.c.l.b16 %v395
    %v524 = vunpack.c.l.b16 %v396
    %v525 = vunpack.c.l.b16 %v397
    %v526 = vunpack.c.l.b16 %v398
    %v527 = vunpack.c.l.b16 %v399
    %v528 = vunpack.c.l.b16 %v400
    %v529 = vunpack.c.l.b16 %v401
    %v530 = vunpack.c.l.b16 %v402
    %v531 = vunpack.c.l.b16 %v403
    %v532 = vunpack.c.l.b16 %v404
    %v533 = vunpack.c.l.b16 %v405
    %v534 = vunpack.c.l.b16 %v406
    %v535 = vunpack.c.l.b16 %v407
    %v536 = vunpack.c.l.b16 %v408
    %v537 = vunpack.c.l.b16 %v409
    %v538 = vunpack.c.l.b16 %v410
    %v539 = vunpack.c.l.b16 %v411
    %v540 = vunpack.c.l.b16 %v412
    %v541 = vunpack.c.l.b16 %v413
    %v542 = vunpack.c.l.b16 %v414
    %v543 = vunpack.c.l.b16 %v415
    %v544 = vunpack.c.l.b16 %v416
    %v545 = vunpack.c.l.b16 %v417
    %v546 = vunpack.c.l.b16 %v418
    %v547 = vunpack.c.l.b16 %v419
    %v548 = vunpack.c.l.b16 %v420
    %v549 = vunpack.c.l.b16 %v421
    %v550 = vunpack.c.l.b16 %v422
    %v551 = vunpack.c.l.b16 %v423
    %v552 = vunpack.c.l.b16 %v424
    %v553 = vunpack.c.l.b16 %v425
    %v554 = vunpack.c.l.b16 %v426
    %v555 = vunpack.c.l.b16 %v427
    %v556 = vunpack.c.l.b16 %v428
    %v557 = vunpack.c.l.b16 %v429
    %v558 = vunpack.c.l.b16 %v430
    %v559 = vpack.c.b16 %v496, %v495
    %v560 = vpack.c.b16 %v498, %v497
    %v561 = vpack.c.b16 %v500, %v499
    %v562 = vpack.c.b16 %v502, %v501
    %v563 = vpack.c.b16 %v504, %v503
    %v564 = vpack.c.b16 %v506, %v505
    %v565 = vpack.c.b16 %v508, %v507
    %v566 = vpack.c.b16 %v510, %v509
    %v567 = vpack.c.b16 %v512, %v511
    %v568 = vpack.c.b16 %v514, %v513
    %v569 = vpack.c.b16 %v516, %v515
    %v570 = vpack.c.b16 %v518, %v517
    %v571 = vpack.c.b16 %v520, %v519
    %v572 = vpack.c.b16 %v522, %v521
    %v573 = vpack.c.b16 %v524, %v523
    %v574 = vpack.c.b16 %v526, %v525
    %v575 = vpack.c.b16 %v528, %v527
    %v576 = vpack.c.b16 %v530, %v529
    %v577 = vpack.c.b16 %v532, %v531
    %v578 = vpack.c.b16 %v534, %v533
    %v579 = vpack.c.b16 %v536, %v535
    %v580 = vpack.c.b16 %v538, %v537
    %v581 = vpack.c.b16 %v540, %v539
    %v582 = vpack.c.b16 %v542, %v541
    %v583 = vpack.c.b16 %v544, %v543
    %v584 = vpack.c.b16 %v546, %v545
    %v585 = vpack.c.b16 %v548, %v547
    %v586 = vpack.c.b16 %v550, %v549
    %v587 = vpack.c.b16 %v552, %v551
    %v588 = vpack.c.b16 %v554, %v553
    %v589 = vpack.c.b16 %v556, %v555
    %v590 = vpack.c.b16 %v558, %v557
    %623 = vmatprep.subr.bf16.mxu0 0
    %624 = vmatpush1.bf16.msra.mxu0 %v559
    %625 = vmatprep.subr.bf16.mxu0 0
    %626 = vmatpush1.bf16.msra.mxu0 %v560
    %627 = vmatprep.subr.bf16.mxu0 0
    %628 = vmatpush1.bf16.msra.mxu0 %v561
    %629 = vmatprep.subr.bf16.mxu0 0
    %630 = vmatpush1.bf16.msra.mxu0 %v562
    %631 = vmatprep.subr.bf16.mxu0 0
    %632 = vmatpush1.bf16.msra.mxu0 %v563
    %633 = vmatprep.subr.bf16.mxu0 0
    %634 = vmatpush1.bf16.msra.mxu0 %v564
    %635 = vmatprep.subr.bf16.mxu0 0
    %636 = vmatpush1.bf16.msra.mxu0 %v565
    %637 = vmatprep.subr.bf16.mxu0 0
    %638 = vmatpush1.bf16.msra.mxu0 %v566
    %639 = vmatprep.subr.bf16.mxu0 0
    %640 = vmatpush1.bf16.msra.mxu0 %v567
    %641 = vmatprep.subr.bf16.mxu0 0
    %642 = vmatpush1.bf16.msra.mxu0 %v568
    %643 = vmatprep.subr.bf16.mxu0 0
    %644 = vmatpush1.bf16.msra.mxu0 %v569
    %645 = vmatprep.subr.bf16.mxu0 0
    %646 = vmatpush1.bf16.msra.mxu0 %v570
    %647 = vmatprep.subr.bf16.mxu0 0
    %648 = vmatpush1.bf16.msra.mxu0 %v571
    %649 = vmatprep.subr.bf16.mxu0 0
    %650 = vmatpush1.bf16.msra.mxu0 %v572
    %651 = vmatprep.subr.bf16.mxu0 0
    %652 = vmatpush1.bf16.msra.mxu0 %v573
    %653 = vmatprep.subr.bf16.mxu0 0
    %654 = vmatpush1.bf16.msra.mxu0 %v574
    %655 = vmatprep.mubr.bf16.mxu0 %v364
    %656 = vmatmul.mubr.bf16.gmra.mrb[0].mxu0 %v363
    %v657 = vpop.f32.mrb[0].mxu0
    %v658 = vadd.f32 0.0, %v657
    %v659 = vpop.f32.mrb[0].mxu0
    %v660 = vpop.f32.mrb[0].mxu0
    %v661 = vadd.f32 0.0, %v660
    %v662 = vpop.f32.mrb[0].mxu0
    %663 = vdwg.mxu0
    %664 = vmatprep.subr.bf16.mxu0 0
    %665 = vmatpush1.bf16.msra.mxu0 %v575
    %666 = vmatprep.subr.bf16.mxu0 0
    %667 = vmatpush1.bf16.msra.mxu0 %v576
    %668 = vmatprep.subr.bf16.mxu0 0
    %669 = vmatpush1.bf16.msra.mxu0 %v577
    %670 = vmatprep.subr.bf16.mxu0 0
    %671 = vmatpush1.bf16.msra.mxu0 %v578
    %672 = vmatprep.subr.bf16.mxu0 0
    %673 = vmatpush1.bf16.msra.mxu0 %v579
    %674 = vmatprep.subr.bf16.mxu0 0
    %675 = vmatpush1.bf16.msra.mxu0 %v580
    %676 = vmatprep.subr.bf16.mxu0 0
    %677 = vmatpush1.bf16.msra.mxu0 %v581
    %678 = vmatprep.subr.bf16.mxu0 0
    %679 = vmatpush1.bf16.msra.mxu0 %v582
    %680 = vmatprep.subr.bf16.mxu0 0
    %681 = vmatpush1.bf16.msra.mxu0 %v583
    %682 = vmatprep.subr.bf16.mxu0 0
    %683 = vmatpush1.bf16.msra.mxu0 %v584
    %684 = vmatprep.subr.bf16.mxu0 0
    %685 = vmatpush1.bf16.msra.mxu0 %v585
    %686 = vmatprep.subr.bf16.mxu0 0
    %687 = vmatpush1.bf16.msra.mxu0 %v586
    %688 = vmatprep.subr.bf16.mxu0 0
    %689 = vmatpush1.bf16.msra.mxu0 %v587
    %690 = vmatprep.subr.bf16.mxu0 0
    %691 = vmatpush1.bf16.msra.mxu0 %v588
    %692 = vmatprep.subr.bf16.mxu0 0
    %693 = vmatpush1.bf16.msra.mxu0 %v589
    %694 = vmatprep.subr.bf16.mxu0 0
    %695 = vmatpush1.bf16.msra.mxu0 %v590
    %696 = vmatprep.mubr.bf16.mxu0 %v366
    %697 = vmatmul.mubr.bf16.gmra.mrb[0].mxu0 %v365
    %v698 = vpop.f32.mrb[0].mxu0
    %v699 = vadd.f32 %v658, %v698
    %v700 = vpop.f32.mrb[0].mxu0
    %v701 = vpop.f32.mrb[0].mxu0
    %v702 = vadd.f32 %v661, %v701
    %v703 = vpop.f32.mrb[0].mxu0
    %704 = vdwg.mxu0
    %v705 = vsel %vm362, 0.125, 0.0
    %v706 = vmul.f32 %v699, %v705
    %v707 = vmul.f32 %v702, %v705
    %v708 = vpack.c.bf16 %v707, %v706
    %v709 = vld [vmem:[#allocation4] sm:$0xff]
    %v710 = vld [vmem:[#allocation4 + $0x8] sm:$0xff]
    %v711 = vld [vmem:[#allocation4 + $0x10] sm:$0xff]
    %v712 = vld [vmem:[#allocation4 + $0x18] sm:$0xff]
    %v713 = vld [vmem:[#allocation4 + $0x20] sm:$0xff]
    %v714 = vld [vmem:[#allocation4 + $0x28] sm:$0xff]
    %v715 = vld [vmem:[#allocation4 + $0x30] sm:$0xff]
    %v716 = vld [vmem:[#allocation4 + $0x38] sm:$0xff]
    %v717 = vld [vmem:[#allocation4 + $0x40] sm:$0xff]
    %v718 = vld [vmem:[#allocation4 + $0x48] sm:$0xff]
    %v719 = vld [vmem:[#allocation4 + $0x50] sm:$0xff]
    %v720 = vld [vmem:[#allocation4 + $0x58] sm:$0xff]
    %v721 = vld [vmem:[#allocation4 + $0x60] sm:$0xff]
    %v722 = vld [vmem:[#allocation4 + $0x68] sm:$0xff]
    %v723 = vld [vmem:[#allocation4 + $0x70] sm:$0xff]
    %v724 = vld [vmem:[#allocation4 + $0x78] sm:$0xff]
    %v725 = vld [vmem:[#allocation4 + $0x80] sm:$0xff]
    %v726 = vld [vmem:[#allocation4 + $0x88] sm:$0xff]
    %v727 = vld [vmem:[#allocation4 + $0x90] sm:$0xff]
    %v728 = vld [vmem:[#allocation4 + $0x98] sm:$0xff]
    %v729 = vld [vmem:[#allocation4 + $0xa0] sm:$0xff]
    %v730 = vld [vmem:[#allocation4 + $0xa8] sm:$0xff]
    %v731 = vld [vmem:[#allocation4 + $0xb0] sm:$0xff]
    %v732 = vld [vmem:[#allocation4 + $0xb8] sm:$0xff]
    %v733 = vld [vmem:[#allocation4 + $0xc0] sm:$0xff]
    %v734 = vld [vmem:[#allocation4 + $0xc8] sm:$0xff]
    %v735 = vld [vmem:[#allocation4 + $0xd0] sm:$0xff]
    %v736 = vld [vmem:[#allocation4 + $0xd8] sm:$0xff]
    %v737 = vld [vmem:[#allocation4 + $0xe0] sm:$0xff]
    %v738 = vld [vmem:[#allocation4 + $0xe8] sm:$0xff]
    %v739 = vld [vmem:[#allocation4 + $0xf0] sm:$0xff]
    %v740 = vld [vmem:[#allocation4 + $0xf8] sm:$0xff]
    %v773 = vunpack.c.l.b16 %v709
    %v774 = vunpack.c.h.b16 %v709
    %v775 = vunpack.c.l.b16 %v710
    %v776 = vunpack.c.h.b16 %v710
    %v777 = vunpack.c.l.b16 %v711
    %v778 = vunpack.c.h.b16 %v711
    %v779 = vunpack.c.l.b16 %v712
    %v780 = vunpack.c.h.b16 %v712
    %v781 = vunpack.c.l.b16 %v713
    %v782 = vunpack.c.h.b16 %v713
    %v783 = vunpack.c.l.b16 %v714
    %v784 = vunpack.c.h.b16 %v714
    %v785 = vunpack.c.l.b16 %v715
    %v786 = vunpack.c.h.b16 %v715
    %v787 = vunpack.c.l.b16 %v716
    %v788 = vunpack.c.h.b16 %v716
    %v789 = vunpack.c.l.b16 %v717
    %v790 = vunpack.c.h.b16 %v717
    %v791 = vunpack.c.l.b16 %v718
    %v792 = vunpack.c.h.b16 %v718
    %v793 = vunpack.c.l.b16 %v719
    %v794 = vunpack.c.h.b16 %v719
    %v795 = vunpack.c.l.b16 %v720
    %v796 = vunpack.c.h.b16 %v720
    %v797 = vunpack.c.l.b16 %v721
    %v798 = vunpack.c.h.b16 %v721
    %v799 = vunpack.c.l.b16 %v722
    %v800 = vunpack.c.h.b16 %v722
    %v801 = vunpack.c.l.b16 %v723
    %v802 = vunpack.c.h.b16 %v723
    %v803 = vunpack.c.l.b16 %v724
    %v804 = vunpack.c.h.b16 %v724
    %v805 = vunpack.c.l.b16 %v725
    %v806 = vunpack.c.h.b16 %v725
    %v807 = vunpack.c.l.b16 %v726
    %v808 = vunpack.c.h.b16 %v726
    %v809 = vunpack.c.l.b16 %v727
    %v810 = vunpack.c.h.b16 %v727
    %v811 = vunpack.c.l.b16 %v728
    %v812 = vunpack.c.h.b16 %v728
    %v813 = vunpack.c.l.b16 %v729
    %v814 = vunpack.c.h.b16 %v729
    %v815 = vunpack.c.l.b16 %v730
    %v816 = vunpack.c.h.b16 %v730
    %v817 = vunpack.c.l.b16 %v731
    %v818 = vunpack.c.h.b16 %v731
    %v819 = vunpack.c.l.b16 %v732
    %v820 = vunpack.c.h.b16 %v732
    %v821 = vunpack.c.l.b16 %v733
    %v822 = vunpack.c.h.b16 %v733
    %v823 = vunpack.c.l.b16 %v734
    %v824 = vunpack.c.h.b16 %v734
    %v825 = vunpack.c.l.b16 %v735
    %v826 = vunpack.c.h.b16 %v735
    %v827 = vunpack.c.l.b16 %v736
    %v828 = vunpack.c.h.b16 %v736
    %v829 = vunpack.c.l.b16 %v737
    %v830 = vunpack.c.h.b16 %v737
    %v831 = vunpack.c.l.b16 %v738
    %v832 = vunpack.c.h.b16 %v738
    %v833 = vunpack.c.l.b16 %v739
    %v834 = vunpack.c.h.b16 %v739
    %v835 = vunpack.c.l.b16 %v740
    %v836 = vunpack.c.h.b16 %v740
    %v837 = vpack.c.b16 %v777, %v773
    %v838 = vpack.c.b16 %v778, %v774
    %v839 = vpack.c.b16 %v779, %v775
    %v840 = vpack.c.b16 %v780, %v776
    %v841 = vpack.c.b16 %v785, %v781
    %v842 = vpack.c.b16 %v786, %v782
    %v843 = vpack.c.b16 %v787, %v783
    %v844 = vpack.c.b16 %v788, %v784
    %v845 = vpack.c.b16 %v793, %v789
    %v846 = vpack.c.b16 %v794, %v790
    %v847 = vpack.c.b16 %v795, %v791
    %v848 = vpack.c.b16 %v796, %v792
    %v849 = vpack.c.b16 %v801, %v797
    %v850 = vpack.c.b16 %v802, %v798
    %v851 = vpack.c.b16 %v803, %v799
    %v852 = vpack.c.b16 %v804, %v800
    %v853 = vpack.c.b16 %v809, %v805
    %v854 = vpack.c.b16 %v810, %v806
    %v855 = vpack.c.b16 %v811, %v807
    %v856 = vpack.c.b16 %v812, %v808
    %v857 = vpack.c.b16 %v817, %v813
    %v858 = vpack.c.b16 %v818, %v814
    %v859 = vpack.c.b16 %v819, %v815
    %v860 = vpack.c.b16 %v820, %v816
    %v861 = vpack.c.b16 %v825, %v821
    %v862 = vpack.c.b16 %v826, %v822
    %v863 = vpack.c.b16 %v827, %v823
    %v864 = vpack.c.b16 %v828, %v824
    %v865 = vpack.c.b16 %v833, %v829
    %v866 = vpack.c.b16 %v834, %v830
    %v867 = vpack.c.b16 %v835, %v831
    %v868 = vpack.c.b16 %v836, %v832
    %901 = vmatprep.subr.bf16.mxu0 %v838
    %902 = vmatpush1.bf16.msra.mxu0 %v837
    %903 = vmatprep.subr.bf16.mxu0 %v842
    %904 = vmatpush1.bf16.msra.mxu0 %v841
    %905 = vmatprep.subr.bf16.mxu0 %v846
    %906 = vmatpush1.bf16.msra.mxu0 %v845
    %907 = vmatprep.subr.bf16.mxu0 %v850
    %908 = vmatpush1.bf16.msra.mxu0 %v849
    %909 = vmatprep.subr.bf16.mxu0 %v854
    %910 = vmatpush1.bf16.msra.mxu0 %v853
    %911 = vmatprep.subr.bf16.mxu0 %v858
    %912 = vmatpush1.bf16.msra.mxu0 %v857
    %913 = vmatprep.subr.bf16.mxu0 %v862
    %914 = vmatpush1.bf16.msra.mxu0 %v861
    %915 = vmatprep.subr.bf16.mxu0 %v866
    %916 = vmatpush1.bf16.msra.mxu0 %v865
    %917 = vmatprep.subr.bf16.mxu0 0
    %918 = vmatpush1.bf16.msra.mxu0 0
    %919 = vmatprep.subr.bf16.mxu0 0
    %920 = vmatpush1.bf16.msra.mxu0 0
    %921 = vmatprep.subr.bf16.mxu0 0
    %922 = vmatpush1.bf16.msra.mxu0 0
    %923 = vmatprep.subr.bf16.mxu0 0
    %924 = vmatpush1.bf16.msra.mxu0 0
    %925 = vmatprep.subr.bf16.mxu0 0
    %926 = vmatpush1.bf16.msra.mxu0 0
    %927 = vmatprep.subr.bf16.mxu0 0
    %928 = vmatpush1.bf16.msra.mxu0 0
    %929 = vmatprep.subr.bf16.mxu0 0
    %930 = vmatpush1.bf16.msra.mxu0 0
    %931 = vmatprep.subr.bf16.mxu0 0
    %932 = vmatpush1.bf16.msra.mxu0 0
    %933 = vmatprep.mubr.bf16.mxu0 0
    %934 = vmatmul.mubr.bf16.gmra.mrb[0].mxu0 %v708
    %v935 = vpop.f32.mrb[0].mxu0
    %v936 = vadd.f32 0.0, %v935
    %v937 = vpop.f32.mrb[0].mxu0
    %v938 = vadd.f32 0.0, %v937
    %v939 = vpop.f32.mrb[0].mxu0
    %v940 = vadd.f32 0.0, %v939
    %v941 = vpop.f32.mrb[0].mxu0
    %v942 = vadd.f32 0.0, %v941
    %943 = vdwg.mxu0
    %944 = vmatprep.subr.bf16.mxu0 %v840
    %945 = vmatpush1.bf16.msra.mxu0 %v839
    %946 = vmatprep.subr.bf16.mxu0 %v844
    %947 = vmatpush1.bf16.msra.mxu0 %v843
    %948 = vmatprep.subr.bf16.mxu0 %v848
    %949 = vmatpush1.bf16.msra.mxu0 %v847
    %950 = vmatprep.subr.bf16.mxu0 %v852
    %951 = vmatpush1.bf16.msra.mxu0 %v851
    %952 = vmatprep.subr.bf16.mxu0 %v856
    %953 = vmatpush1.bf16.msra.mxu0 %v855
    %954 = vmatprep.subr.bf16.mxu0 %v860
    %955 = vmatpush1.bf16.msra.mxu0 %v859
    %956 = vmatprep.subr.bf16.mxu0 %v864
    %957 = vmatpush1.bf16.msra.mxu0 %v863
    %958 = vmatprep.subr.bf16.mxu0 %v868
    %959 = vmatpush1.bf16.msra.mxu0 %v867
    %960 = vmatprep.subr.bf16.mxu0 0
    %961 = vmatpush1.bf16.msra.mxu0 0
    %962 = vmatprep.subr.bf16.mxu0 0
    %963 = vmatpush1.bf16.msra.mxu0 0
    %964 = vmatprep.subr.bf16.mxu0 0
    %965 = vmatpush1.bf16.msra.mxu0 0
    %966 = vmatprep.subr.bf16.mxu0 0
    %967 = vmatpush1.bf16.msra.mxu0 0
    %968 = vmatprep.subr.bf16.mxu0 0
    %969 = vmatpush1.bf16.msra.mxu0 0
    %970 = vmatprep.subr.bf16.mxu0 0
    %971 = vmatpush1.bf16.msra.mxu0 0
    %972 = vmatprep.subr.bf16.mxu0 0
    %973 = vmatpush1.bf16.msra.mxu0 0
    %974 = vmatprep.subr.bf16.mxu0 0
    %975 = vmatpush1.bf16.msra.mxu0 0
    %976 = vmatprep.mubr.bf16.mxu0 0
    %977 = vmatmul.mubr.bf16.gmra.mrb[0].mxu0 %v708
    %v978 = vpop.f32.mrb[0].mxu0
    %v979 = vadd.f32 0.0, %v978
    %v980 = vpop.f32.mrb[0].mxu0
    %v981 = vadd.f32 0.0, %v980
    %v982 = vpop.f32.mrb[0].mxu0
    %v983 = vadd.f32 0.0, %v982
    %v984 = vpop.f32.mrb[0].mxu0
    %v985 = vadd.f32 0.0, %v984
    %986 = vdwg.mxu0
    %v987 = vsub.f32 %v306, %v936
    %v988 = vsub.f32 %v308, %v938
    %v989 = vsub.f32 %v349, %v979
    %v990 = vsub.f32 %v351, %v981
    %v991 = vsub.f32 %v310, %v940
    %v992 = vsub.f32 %v312, %v942
    %v993 = vsub.f32 %v353, %v983
    %v994 = vsub.f32 %v355, %v985
    %v995 = vmul.f32 %v987, %v987
    %v996 = vmul.f32 %v988, %v988
    %v997 = vmul.f32 %v989, %v989
    %v998 = vmul.f32 %v990, %v990
    %v999 = vmul.f32 %v991, %v991
    %v1000 = vmul.f32 %v992, %v992
    %v1001 = vmul.f32 %v993, %v993
    %v1002 = vmul.f32 %v994, %v994
    %v1003 = vpack.c.bf16 %v999, %v995
    %v1004 = vpack.c.bf16 %v1000, %v996
    %v1005 = vpack.c.bf16 %v1001, %v997
    %v1006 = vpack.c.bf16 %v1002, %v998
    %1007 = vmatprep.subr.bf16.mxu0 0
    %1008 = vmatpush1.bf16.msra.mxu0 %v559
    %1009 = vmatprep.subr.bf16.mxu0 0
    %1010 = vmatpush1.bf16.msra.mxu0 %v560
    %1011 = vmatprep.subr.bf16.mxu0 0
    %1012 = vmatpush1.bf16.msra.mxu0 %v561
    %1013 = vmatprep.subr.bf16.mxu0 0
    %1014 = vmatpush1.bf16.msra.mxu0 %v562
    %1015 = vmatprep.subr.bf16.mxu0 0
    %1016 = vmatpush1.bf16.msra.mxu0 %v563
    %1017 = vmatprep.subr.bf16.mxu0 0
    %1018 = vmatpush1.bf16.msra.mxu0 %v564
    %1019 = vmatprep.subr.bf16.mxu0 0
    %1020 = vmatpush1.bf16.msra.mxu0 %v565
    %1021 = vmatprep.subr.bf16.mxu0 0
    %1022 = vmatpush1.bf16.msra.mxu0 %v566
    %1023 = vmatprep.subr.bf16.mxu0 0
    %1024 = vmatpush1.bf16.msra.mxu0 %v567
    %1025 = vmatprep.subr.bf16.mxu0 0
    %1026 = vmatpush1.bf16.msra.mxu0 %v568
    %1027 = vmatprep.subr.bf16.mxu0 0
    %1028 = vmatpush1.bf16.msra.mxu0 %v569
    %1029 = vmatprep.subr.bf16.mxu0 0
    %1030 = vmatpush1.bf16.msra.mxu0 %v570
    %1031 = vmatprep.subr.bf16.mxu0 0
    %1032 = vmatpush1.bf16.msra.mxu0 %v571
    %1033 = vmatprep.subr.bf16.mxu0 0
    %1034 = vmatpush1.bf16.msra.mxu0 %v572
    %1035 = vmatprep.subr.bf16.mxu0 0
    %1036 = vmatpush1.bf16.msra.mxu0 %v573
    %1037 = vmatprep.subr.bf16.mxu0 0
    %1038 = vmatpush1.bf16.msra.mxu0 %v574
    %1039 = vmatprep.mubr.bf16.mxu0 %v1004
    %1040 = vmatmul.mubr.bf16.gmra.mrb[0].mxu0 %v1003
    %v1041 = vpop.f32.mrb[0].mxu0
    %v1042 = vadd.f32 0.0, %v1041
    %v1043 = vpop.f32.mrb[0].mxu0
    %v1044 = vpop.f32.mrb[0].mxu0
    %v1045 = vadd.f32 0.0, %v1044
    %v1046 = vpop.f32.mrb[0].mxu0
    %1047 = vdwg.mxu0
    %1048 = vmatprep.subr.bf16.mxu0 0
    %1049 = vmatpush1.bf16.msra.mxu0 %v575
    %1050 = vmatprep.subr.bf16.mxu0 0
    %1051 = vmatpush1.bf16.msra.mxu0 %v576
    %1052 = vmatprep.subr.bf16.mxu0 0
    %1053 = vmatpush1.bf16.msra.mxu0 %v577
    %1054 = vmatprep.subr.bf16.mxu0 0
    %1055 = vmatpush1.bf16.msra.mxu0 %v578
    %1056 = vmatprep.subr.bf16.mxu0 0
    %1057 = vmatpush1.bf16.msra.mxu0 %v579
    %1058 = vmatprep.subr.bf16.mxu0 0
    %1059 = vmatpush1.bf16.msra.mxu0 %v580
    %1060 = vmatprep.subr.bf16.mxu0 0
    %1061 = vmatpush1.bf16.msra.mxu0 %v581
    %1062 = vmatprep.subr.bf16.mxu0 0
    %1063 = vmatpush1.bf16.msra.mxu0 %v582
    %1064 = vmatprep.subr.bf16.mxu0 0
    %1065 = vmatpush1.bf16.msra.mxu0 %v583
    %1066 = vmatprep.subr.bf16.mxu0 0
    %1067 = vmatpush1.bf16.msra.mxu0 %v584
    %1068 = vmatprep.subr.bf16.mxu0 0
    %1069 = vmatpush1.bf16.msra.mxu0 %v585
    %1070 = vmatprep.subr.bf16.mxu0 0
    %1071 = vmatpush1.bf16.msra.mxu0 %v586
    %1072 = vmatprep.subr.bf16.mxu0 0
    %1073 = vmatpush1.bf16.msra.mxu0 %v587
    %1074 = vmatprep.subr.bf16.mxu0 0
    %1075 = vmatpush1.bf16.msra.mxu0 %v588
    %1076 = vmatprep.subr.bf16.mxu0 0
    %1077 = vmatpush1.bf16.msra.mxu0 %v589
    %1078 = vmatprep.subr.bf16.mxu0 0
    %1079 = vmatpush1.bf16.msra.mxu0 %v590
    %1080 = vmatprep.mubr.bf16.mxu0 %v1006
    %1081 = vmatmul.mubr.bf16.gmra.mrb[0].mxu0 %v1005
    %v1082 = vpop.f32.mrb[0].mxu0
    %v1083 = vadd.f32 %v1042, %v1082
    %v1084 = vpop.f32.mrb[0].mxu0
    %v1085 = vpop.f32.mrb[0].mxu0
    %v1086 = vadd.f32 %v1045, %v1085
    %v1087 = vpop.f32.mrb[0].mxu0
    %1088 = vdwg.mxu0
    %v1089 = vsel %vm359, 0.25, %v705
    %v1090 = vsel %vm362, 1e-05, 0.01
    %v1091 = vmul.f32 %v1083, %v1089
    %v1092 = vmul.f32 %v1086, %v1089
    %v1093 = vadd.f32 %v1091, %v1090
    %v1094 = vadd.f32 %v1092, %v1090
    %v1095 = vrsqrt.pop %v1093
    %v1096 = vrsqrt.pop %v1094
    %v1097 = vpack.c.bf16 %v1096, %v1095
    %1098 = vmatprep.subr.bf16.mxu0 %v838
    %1099 = vmatpush1.bf16.msra.mxu0 %v837
    %1100 = vmatprep.subr.bf16.mxu0 %v842
    %1101 = vmatpush1.bf16.msra.mxu0 %v841
    %1102 = vmatprep.subr.bf16.mxu0 %v846
    %1103 = vmatpush1.bf16.msra.mxu0 %v845
    %1104 = vmatprep.subr.bf16.mxu0 %v850
    %1105 = vmatpush1.bf16.msra.mxu0 %v849
    %1106 = vmatprep.subr.bf16.mxu0 %v854
    %1107 = vmatpush1.bf16.msra.mxu0 %v853
    %1108 = vmatprep.subr.bf16.mxu0 %v858
    %1109 = vmatpush1.bf16.msra.mxu0 %v857
    %1110 = vmatprep.subr.bf16.mxu0 %v862
    %1111 = vmatpush1.bf16.msra.mxu0 %v861
    %1112 = vmatprep.subr.bf16.mxu0 %v866
    %1113 = vmatpush1.bf16.msra.mxu0 %v865
    %1114 = vmatprep.subr.bf16.mxu0 0
    %1115 = vmatpush1.bf16.msra.mxu0 0
    %1116 = vmatprep.subr.bf16.mxu0 0
    %1117 = vmatpush1.bf16.msra.mxu0 0
    %1118 = vmatprep.subr.bf16.mxu0 0
    %1119 = vmatpush1.bf16.msra.mxu0 0
    %1120 = vmatprep.subr.bf16.mxu0 0
    %1121 = vmatpush1.bf16.msra.mxu0 0
    %1122 = vmatprep.subr.bf16.mxu0 0
    %1123 = vmatpush1.bf16.msra.mxu0 0
    %1124 = vmatprep.subr.bf16.mxu0 0
    %1125 = vmatpush1.bf16.msra.mxu0 0
    %1126 = vmatprep.subr.bf16.mxu0 0
    %1127 = vmatpush1.bf16.msra.mxu0 0
    %1128 = vmatprep.subr.bf16.mxu0 0
    %1129 = vmatpush1.bf16.msra.mxu0 0
    %1130 = vmatprep.mubr.bf16.mxu0 0
    %1131 = vmatmul.mubr.bf16.gmra.mrb[0].mxu0 %v1097
    %v1132 = vpop.f32.mrb[0].mxu0
    %v1133 = vadd.f32 0.0, %v1132
    %v1134 = vpop.f32.mrb[0].mxu0
    %v1135 = vadd.f32 0.0, %v1134
    %v1136 = vpop.f32.mrb[0].mxu0
    %v1137 = vadd.f32 0.0, %v1136
    %v1138 = vpop.f32.mrb[0].mxu0
    %v1139 = vadd.f32 0.0, %v1138
    %1140 = vdwg.mxu0
    %1141 = vmatprep.subr.bf16.mxu0 %v840
    %1142 = vmatpush1.bf16.msra.mxu0 %v839
    %1143 = vmatprep.subr.bf16.mxu0 %v844
    %1144 = vmatpush1.bf16.msra.mxu0 %v843
    %1145 = vmatprep.subr.bf16.mxu0 %v848
    %1146 = vmatpush1.bf16.msra.mxu0 %v847
    %1147 = vmatprep.subr.bf16.mxu0 %v852
    %1148 = vmatpush1.bf16.msra.mxu0 %v851
    %1149 = vmatprep.subr.bf16.mxu0 %v856
    %1150 = vmatpush1.bf16.msra.mxu0 %v855
    %1151 = vmatprep.subr.bf16.mxu0 %v860
    %1152 = vmatpush1.bf16.msra.mxu0 %v859
    %1153 = vmatprep.subr.bf16.mxu0 %v864
    %1154 = vmatpush1.bf16.msra.mxu0 %v863
    %1155 = vmatprep.subr.bf16.mxu0 %v868
    %1156 = vmatpush1.bf16.msra.mxu0 %v867
    %1157 = vmatprep.subr.bf16.mxu0 0
    %1158 = vmatpush1.bf16.msra.mxu0 0
    %1159 = vmatprep.subr.bf16.mxu0 0
    %1160 = vmatpush1.bf16.msra.mxu0 0
    %1161 = vmatprep.subr.bf16.mxu0 0
    %1162 = vmatpush1.bf16.msra.mxu0 0
    %1163 = vmatprep.subr.bf16.mxu0 0
    %1164 = vmatpush1.bf16.msra.mxu0 0
    %1165 = vmatprep.subr.bf16.mxu0 0
    %1166 = vmatpush1.bf16.msra.mxu0 0
    %1167 = vmatprep.subr.bf16.mxu0 0
    %1168 = vmatpush1.bf16.msra.mxu0 0
    %1169 = vmatprep.subr.bf16.mxu0 0
    %1170 = vmatpush1.bf16.msra.mxu0 0
    %1171 = vmatprep.subr.bf16.mxu0 0
    %1172 = vmatpush1.bf16.msra.mxu0 0
    %1173 = vmatprep.mubr.bf16.mxu0 0
    %1174 = vmatmul.mubr.bf16.gmra.mrb[0].mxu0 %v1097
    %v1175 = vpop.f32.mrb[0].mxu0
    %v1176 = vadd.f32 0.0, %v1175
    %v1177 = vpop.f32.mrb[0].mxu0
    %v1178 = vadd.f32 0.0, %v1177
    %v1179 = vpop.f32.mrb[0].mxu0
    %v1180 = vadd.f32 0.0, %v1179
    %v1181 = vpop.f32.mrb[0].mxu0
    %v1182 = vadd.f32 0.0, %v1181
    %1183 = vdwg.mxu0
    %v1184 = vmul.f32 %v987, %v1133
    %v1185 = vmul.f32 %v988, %v1135
    %v1186 = vmul.f32 %v989, %v1176
    %v1187 = vmul.f32 %v990, %v1178
    %v1188 = vmul.f32 %v991, %v1137
    %v1189 = vmul.f32 %v992, %v1139
    %v1190 = vmul.f32 %v993, %v1180
    %v1191 = vmul.f32 %v994, %v1182
    %1192 = vst [vmem:[%s5] sm:$0xff] %v1184
    %1193 = vst [vmem:[%s5 + $0x8] sm:$0xff] %v1185
    %1194 = vst [vmem:[%s5 + $0x10] sm:$0xff] %v1186
    %1195 = vst [vmem:[%s5 + $0x18] sm:$0xff] %v1187
    %1196 = vst [vmem:[%s5 + $0x20] sm:$0xff] %v1188
    %1197 = vst [vmem:[%s5 + $0x28] sm:$0xff] %v1189
    %1198 = vst [vmem:[%s5 + $0x30] sm:$0xff] %v1190
    %1199 = vst [vmem:[%s5 + $0x38] sm:$0xff] %v1191
    // Predicated region
    $region30: #{qkv_module_forward.1} parent=1 // pred_check
      _
    $region31: #{qkv_module_forward.1} parent=1 // pred_check_branch
      %1201 = sbr.rel (0) target = $region33
    $region32: #{qkv_module_forward.1} parent=1 // pred_region
      _
    $region33: #{qkv_module_forward.1} parent=1 // pred_fallthru
      _
    // Predicated region
    $region34: #{qkv_module_forward.1} parent=1 // pred_check
      _
    $region35: #{qkv_module_forward.1} parent=1 // pred_check_branch
      %1203 = sbr.rel (0) target = $region37
    $region36: #{qkv_module_forward.1} parent=1 // pred_region
      _
    $region37: #{qkv_module_forward.1} parent=1 // pred_fallthru
      _
    %1204 = vsyncpa [#allocation3], 1
    %1205 = vsyncpa [#allocation5], 1

</llo_original>
